<compile_context>
chip_gen: v6e
topology: v6e:2x2x1
jax: 0.10.0
libtpu: 0.0.40
codegen_flags: <defaults>
</compile_context>

<pallas_src>
import jax
import jax.numpy as jnp
from jax.experimental import pallas as pl
from jax.experimental.pallas import tpu as pltpu


def linear_kernel(x_ref, w_ref, b_ref, o_ref):
    """y = x @ W^T + b, fully unrolled on the VPU.

    x_ref: VMEM [TB, in_f]
    w_ref: SMEM [out_f, in_f]   (PyTorch layout, read as scalars)
    b_ref: SMEM [out_f]
    o_ref: VMEM [TB, out_f]
    """
    out_f, in_f = w_ref.shape
    x = x_ref[...].astype(jnp.float32)          # [TB, in_f], f32 compute (v5e VPU has no bf16)

    cols = []
    for o in range(out_f):                       # out_f = 2 -> fully unrolled
        # scalar(SMEM) * lane-slice broadcasts on the VPU; no MXU push/pop.
        acc = x[:, 0:1] * w_ref[o, 0]
        for k in range(1, in_f):                 # in_f = 3 -> fully unrolled
            acc = acc + x[:, k:k + 1] * w_ref[o, k]
        cols.append(acc + b_ref[o])

    # Single store of the whole [TB, out_f] tile (one vst, not out_f tiny ones).
    o_ref[...] = jnp.concatenate(cols, axis=-1).astype(o_ref.dtype)


def _pick_batch_tile(batch: int) -> int:
    # Small batches: one block == one grid step == minimum fixed overhead.
    if batch <= 1024:
        return batch
    for tb in (1024, 512, 256, 128, 64, 32, 16, 8):
        if batch % tb == 0:
            return tb
    return batch


def linear_pallas(x, weight, bias):
    """Equivalent of torch.nn.Linear(3, 2): y = x @ W^T + b.

    x:      [B, in_features]
    weight: [out_features, in_features]   (PyTorch convention, passed as-is)
    bias:   [out_features]
    """
    B, in_f = x.shape
    out_f = weight.shape[0]

    # SMEM holds 32-bit scalars; parameters are tiny (6 + 2 values).
    if weight.dtype != jnp.float32:
        weight = weight.astype(jnp.float32)
    if bias.dtype != jnp.float32:
        bias = bias.astype(jnp.float32)

    tb = _pick_batch_tile(B)
    grid = (B // tb,)

    return pl.pallas_call(
        linear_kernel,
        out_shape=jax.ShapeDtypeStruct((B, out_f), x.dtype),
        grid=grid,
        in_specs=[
            # Activations: tiled over batch only; feature dim (3) is the full dim.
            pl.BlockSpec((tb, in_f), lambda i: (i, 0)),
            # Parameters: whole arrays in SMEM, no VMEM DMA, no wrapper transpose.
            pl.BlockSpec(memory_space=pltpu.MemorySpace.SMEM),
            pl.BlockSpec(memory_space=pltpu.MemorySpace.SMEM),
        ],
        out_specs=pl.BlockSpec((tb, out_f), lambda i: (i, 0)),
        compiler_params=pltpu.CompilerParams(
            dimension_semantics=("parallel",),
        ),
    )(x, weight, bias)
    # TODO(synk): out_features=2 leaves the output lane axis only 2/128 dense
    # (masked stores); if many such heads exist, fold them into one lane-dense
    # slab or fuse this linear into the surrounding kernel.


if __name__ == "__main__":
    key = jax.random.PRNGKey(0)
    kx, kw, kb = jax.random.split(key, 3)

    in_features, out_features = 3, 2
    batch = 8

    # Deterministic parameter init (mimics nn.Linear uniform(-1/sqrt(in), 1/sqrt(in))).
    bound = 1.0 / (in_features ** 0.5)
    weight = jax.random.uniform(
        kw, (out_features, in_features), jnp.float32, minval=-bound, maxval=bound)
    bias = jax.random.uniform(
        kb, (out_features,), jnp.float32, minval=-bound, maxval=bound)

    x = jax.random.normal(kx, (batch, in_features), jnp.float32)

    y = linear_pallas(x, weight, bias)
    jax.block_until_ready(y)

    # Reference check in plain JAX.
    y_ref = x @ weight.T + bias
    assert y.shape == (batch, out_features)
    assert jnp.allclose(y, y_ref, atol=1e-5, rtol=1e-5)

    print("KERNEL_OK")
</pallas_src>

<mosaic_0001>
module attributes {stable_mosaic.version = 11 : i64} {
  func.func @linear_kernel(%arg0: i32, %arg1: memref<8x3xf32, #tpu.memory_space<vmem>>, %arg2: memref<2x3xf32, #tpu.memory_space<smem>>, %arg3: memref<2xf32, #tpu.memory_space<smem>>, %arg4: memref<8x2xf32, #tpu.memory_space<vmem>>) attributes {dimension_semantics = [#tpu.dimension_semantics<parallel>], iteration_bounds = array<i64: 1>, scalar_prefetch = 0 : i64, scratch_operands = 0 : i64, tpu.core_type = #tpu.core_type<tc>, window_params = [{transform_indices = @transform_0, window_bounds = array<i64: 8, 3>}, {transform_indices = @transform_1, window_bounds = array<i64: 2, 3>}, {transform_indices = @transform_2, window_bounds = array<i64: 2>}, {transform_indices = @transform_3, window_bounds = array<i64: 8, 2>}]} {
    %c0 = arith.constant 0 : index
    %c0_0 = arith.constant 0 : index
    %0 = vector.load %arg1[%c0, %c0_0] : memref<8x3xf32, #tpu.memory_space<vmem>>, vector<8x3xf32>
    %1 = vector.extract_strided_slice %0 {offsets = [0, 0], sizes = [8, 1], strides = [1, 1]} : vector<8x3xf32> to vector<8x1xf32>
    %c0_1 = arith.constant 0 : index
    %c0_2 = arith.constant 0 : index
    %2 = memref.load %arg2[%c0_1, %c0_2] : memref<2x3xf32, #tpu.memory_space<smem>>
    %3 = vector.broadcast %2 : f32 to vector<8x1xf32>
    %4 = arith.mulf %1, %3 : vector<8x1xf32>
    %5 = vector.extract_strided_slice %0 {offsets = [0, 1], sizes = [8, 1], strides = [1, 1]} : vector<8x3xf32> to vector<8x1xf32>
    %c0_3 = arith.constant 0 : index
    %c1 = arith.constant 1 : index
    %6 = memref.load %arg2[%c0_3, %c1] : memref<2x3xf32, #tpu.memory_space<smem>>
    %7 = vector.broadcast %6 : f32 to vector<8x1xf32>
    %8 = arith.mulf %5, %7 : vector<8x1xf32>
    %9 = arith.addf %4, %8 : vector<8x1xf32>
    %10 = vector.extract_strided_slice %0 {offsets = [0, 2], sizes = [8, 1], strides = [1, 1]} : vector<8x3xf32> to vector<8x1xf32>
    %c0_4 = arith.constant 0 : index
    %c2 = arith.constant 2 : index
    %11 = memref.load %arg2[%c0_4, %c2] : memref<2x3xf32, #tpu.memory_space<smem>>
    %12 = vector.broadcast %11 : f32 to vector<8x1xf32>
    %13 = arith.mulf %10, %12 : vector<8x1xf32>
    %14 = arith.addf %9, %13 : vector<8x1xf32>
    %c0_5 = arith.constant 0 : index
    %15 = memref.load %arg3[%c0_5] : memref<2xf32, #tpu.memory_space<smem>>
    %16 = vector.broadcast %15 : f32 to vector<8x1xf32>
    %17 = arith.addf %14, %16 : vector<8x1xf32>
    %18 = vector.extract_strided_slice %0 {offsets = [0, 0], sizes = [8, 1], strides = [1, 1]} : vector<8x3xf32> to vector<8x1xf32>
    %c1_6 = arith.constant 1 : index
    %c0_7 = arith.constant 0 : index
    %19 = memref.load %arg2[%c1_6, %c0_7] : memref<2x3xf32, #tpu.memory_space<smem>>
    %20 = vector.broadcast %19 : f32 to vector<8x1xf32>
    %21 = arith.mulf %18, %20 : vector<8x1xf32>
    %22 = vector.extract_strided_slice %0 {offsets = [0, 1], sizes = [8, 1], strides = [1, 1]} : vector<8x3xf32> to vector<8x1xf32>
    %c1_8 = arith.constant 1 : index
    %c1_9 = arith.constant 1 : index
    %23 = memref.load %arg2[%c1_8, %c1_9] : memref<2x3xf32, #tpu.memory_space<smem>>
    %24 = vector.broadcast %23 : f32 to vector<8x1xf32>
    %25 = arith.mulf %22, %24 : vector<8x1xf32>
    %26 = arith.addf %21, %25 : vector<8x1xf32>
    %27 = vector.extract_strided_slice %0 {offsets = [0, 2], sizes = [8, 1], strides = [1, 1]} : vector<8x3xf32> to vector<8x1xf32>
    %c1_10 = arith.constant 1 : index
    %c2_11 = arith.constant 2 : index
    %28 = memref.load %arg2[%c1_10, %c2_11] : memref<2x3xf32, #tpu.memory_space<smem>>
    %29 = vector.broadcast %28 : f32 to vector<8x1xf32>
    %30 = arith.mulf %27, %29 : vector<8x1xf32>
    %31 = arith.addf %26, %30 : vector<8x1xf32>
    %c1_12 = arith.constant 1 : index
    %32 = memref.load %arg3[%c1_12] : memref<2xf32, #tpu.memory_space<smem>>
    %33 = vector.broadcast %32 : f32 to vector<8x1xf32>
    %34 = arith.addf %31, %33 : vector<8x1xf32>
    %35 = tpu.concatenate %17, %34 in 1 : vector<8x1xf32>, vector<8x1xf32> -> vector<8x2xf32>
    %c0_13 = arith.constant 0 : index
    %c0_14 = arith.constant 0 : index
    %36 = vector.load %arg4[%c0_13, %c0_14] : memref<8x2xf32, #tpu.memory_space<vmem>>, vector<8x2xf32>
    tpu.vector_store %arg4[%c0_13, %c0_14], %35 {strides = array<i32>} : memref<8x2xf32, #tpu.memory_space<vmem>>, vector<8x2xf32>,
    return
  }
  func.func @transform_0(%arg0: i32) -> (i32, i32) {
    %c0_i32 = arith.constant 0 : i32
    %c0_i32_0 = arith.constant 0 : i32
    return %arg0, %c0_i32 : i32, i32
  }
  func.func @transform_1(%arg0: i32) -> (i32, i32) {
    %c0_i32 = arith.constant 0 : i32
    %c0_i32_0 = arith.constant 0 : i32
    %c0_i32_1 = arith.constant 0 : i32
    return %c0_i32, %c0_i32_0 : i32, i32
  }
  func.func @transform_2(%arg0: i32) -> i32 {
    %c0_i32 = arith.constant 0 : i32
    %c0_i32_0 = arith.constant 0 : i32
    return %c0_i32 : i32
  }
  func.func @transform_3(%arg0: i32) -> (i32, i32) {
    %c0_i32 = arith.constant 0 : i32
    %c0_i32_0 = arith.constant 0 : i32
    return %arg0, %c0_i32 : i32, i32
  }
}

</mosaic_0001>

<llo_original>
// kernel: tpu_custom_call.1
$region0: #{tpu_custom_call.1}
  #allocation0 [shape = 'u32[]', space=smem, size = 0x4, offset = 0x4, fixed_abs, tag = 'smem constant byte address 0x4 - core index']
  #allocation1 [shape = 'u32[144,128]{1,0:T(1,128)}', space=vmem, size = 0x12000, scoped, tag = 'internal scratch']
  %s0 = inlined_call_operand.vmem [shape: f32[8,3], index: 0, kind: input, shape index: {}]
  %s1 = inlined_call_operand.vmem [shape: f32[2,3], index: 1, kind: input, shape index: {}]
  %s2 = inlined_call_operand.vmem [shape: f32[2], index: 2, kind: input, shape index: {}]
  %s3 = inlined_call_operand.vmem [shape: f32[8,2], index: 3, kind: output, shape index: {}]
  %s4 = sld [smem:[#allocation0]]
  $region30: #{tpu_custom_call.1} parent=0
    _
  %s6 = ssub.s32 1, %s4
  %s7 = scalar_select 0, %s6, %s4
  $region1: #{tpu_custom_call.1} parent=0
    #allocation2 [shape = 'u8[1024]{0}', space=smem, size = 0x400, scoped, tag = 'input window, operand 1, single buffered']
    #allocation3 [shape = 's32[1]{0}', space=sflag, size = 0x4, scoped, tag = 'scoped memory for tpu_custom_call.1']
    #allocation4 [shape = 'u8[512]{0}', space=smem, size = 0x200, scoped, tag = 'input window, operand 2, single buffered']
    #allocation5 [shape = 's32[1]{0}', space=sflag, size = 0x4, scoped, tag = 'scoped memory for tpu_custom_call.1']
    %8 = vsyncpa [#allocation3], 0
    %9 = vsyncpa [#allocation5], 0
    // Predicated region
    $region2: #{tpu_custom_call.1} parent=1 // pred_check
      _
    $region3: #{tpu_custom_call.1} parent=1 // pred_check_branch
      %11 = sbr.rel (0) target = $region5
    $region4: #{tpu_custom_call.1} parent=1 // pred_region
      _
    $region5: #{tpu_custom_call.1} parent=1 // pred_fallthru
      _
    // Predicated region
    $region6: #{tpu_custom_call.1} parent=1 // pred_check
      _
    $region7: #{tpu_custom_call.1} parent=1 // pred_check_branch
      %13 = sbr.rel (0) target = $region9
    $region8: #{tpu_custom_call.1} parent=1 // pred_region
      %s15 = ssub.s32 32, 32
      %16 = vsyncadd [#allocation3], %s15
      %s18 = sshll.u32 %s1, 4
      %s19 = int_to_ptr.vmem [resolvable:$true] %s18
      %21 = dma.vmem_to_smem %s19, 32, [#allocation2], [#allocation3]
    $region9: #{tpu_custom_call.1} parent=1 // pred_fallthru
      _
    // Predicated region
    $region10: #{tpu_custom_call.1} parent=1 // pred_check
      _
    $region11: #{tpu_custom_call.1} parent=1 // pred_check_branch
      %23 = sbr.rel (0) target = $region13
    $region12: #{tpu_custom_call.1} parent=1 // pred_region
      %s25 = ssub.s32 16, 16
      %26 = vsyncadd [#allocation5], %s25
      %s28 = sshll.u32 %s2, 4
      %s29 = int_to_ptr.vmem [resolvable:$true] %s28
      %31 = dma.vmem_to_smem %s29, 16, [#allocation4], [#allocation5]
    $region13: #{tpu_custom_call.1} parent=1 // pred_fallthru
      _
    // Predicated region
    $region14: #{tpu_custom_call.1} parent=1 // pred_check
      _
    $region15: #{tpu_custom_call.1} parent=1 // pred_check_branch
      %33 = sbr.rel (0) target = $region17
    $region16: #{tpu_custom_call.1} parent=1 // pred_region
      %34 = dma.done [#allocation3], 32
    $region17: #{tpu_custom_call.1} parent=1 // pred_fallthru
      _
    // Predicated region
    $region18: #{tpu_custom_call.1} parent=1 // pred_check
      _
    $region19: #{tpu_custom_call.1} parent=1 // pred_check_branch
      %36 = sbr.rel (0) target = $region21
    $region20: #{tpu_custom_call.1} parent=1 // pred_region
      %37 = dma.done [#allocation5], 16
    $region21: #{tpu_custom_call.1} parent=1 // pred_fallthru
      _
    %38 = sfence
    %v39 = vld [vmem:[%s0] sm:$0xff]
    %s40 = sld [smem:[#allocation2]]
    %v41 = vstv %s40
    %v42 = vmul.f32 %v39, %v41
    %s43 = sld [smem:[#allocation2 + $0x1]]
    %v44 = vstv %s43
    %v45 = vmul.f32 %v39, %v44
    %47 = vrot.lane.b32.xlu0 %v45, 127
    %v48 = vpop.permute.xlu0 %47
    %v50 = vadd.f32 %v42, %v48
    %s51 = sld [smem:[#allocation2 + $0x2]]
    %v52 = vstv %s51
    %v53 = vmul.f32 %v39, %v52
    %55 = vrot.lane.b32.xlu0 %v53, 126
    %v56 = vpop.permute.xlu0 %55
    %v58 = vadd.f32 %v50, %v56
    %s59 = sld [smem:[#allocation4]]
    %v60 = vstv %s59
    %v61 = vadd.f32 %v58, %v60
    %s62 = sld [smem:[#allocation2 + $0x80]]
    %v63 = vstv %s62
    %v64 = vmul.f32 %v39, %v63
    %s65 = sld [smem:[#allocation2 + $0x81]]
    %v66 = vstv %s65
    %v67 = vmul.f32 %v39, %v66
    %69 = vrot.lane.b32.xlu0 %v67, 127
    %v70 = vpop.permute.xlu0 %69
    %v72 = vadd.f32 %v64, %v70
    %s73 = sld [smem:[#allocation2 + $0x82]]
    %v74 = vstv %s73
    %v75 = vmul.f32 %v39, %v74
    %77 = vrot.lane.b32.xlu0 %v75, 126
    %v78 = vpop.permute.xlu0 %77
    %v80 = vadd.f32 %v72, %v78
    %s81 = sld [smem:[#allocation4 + $0x1]]
    %v82 = vstv %s81
    %v83 = vadd.f32 %v80, %v82
    %85 = vrot.lane.b32.xlu0 %v83, 1
    %v86 = vpop.permute.xlu0 %85
    %vm88 = vcmask 7168
    %v89 = vsel %vm88, %v61, %v86
    %vm90 = vcmask 15360
    %91 = vst.msk [vmem:[%s3] sm:$0xff] %vm90, %v89
    // Predicated region
    $region22: #{tpu_custom_call.1} parent=1 // pred_check
      _
    $region23: #{tpu_custom_call.1} parent=1 // pred_check_branch
      %93 = sbr.rel (0) target = $region25
    $region24: #{tpu_custom_call.1} parent=1 // pred_region
      _
    $region25: #{tpu_custom_call.1} parent=1 // pred_fallthru
      _
    // Predicated region
    $region26: #{tpu_custom_call.1} parent=1 // pred_check
      _
    $region27: #{tpu_custom_call.1} parent=1 // pred_check_branch
      %95 = sbr.rel (0) target = $region29
    $region28: #{tpu_custom_call.1} parent=1 // pred_region
      _
    $region29: #{tpu_custom_call.1} parent=1 // pred_fallthru
      _
    %96 = vsyncpa [#allocation3], 1
    %97 = vsyncpa [#allocation5], 1

</llo_original>
